<compile_context>
chip_gen: v7x
topology: tpu7x:2x2x1
jax: 0.10.0
libtpu: 0.0.40
codegen_flags: <defaults>
</compile_context>

<pallas_src>
import functools
import math

import jax
import jax.numpy as jnp
import numpy as np
from jax.experimental import pallas as pl
from jax.experimental.pallas import tpu as pltpu


# ----------------------------------------------------------------------------
# Generation-aware budgets & tiling helpers
# ----------------------------------------------------------------------------

def _device_budget():
    """Return (vmem_limit_bytes, row_tile_target) tuned per TPU generation."""
    vmem_phys = 64 * 1024 * 1024          # conservative default (v7x-sized)
    get_info = getattr(pltpu, "get_tpu_info", None)
    if get_info is not None:
        try:
            cap = getattr(get_info(), "vmem_capacity_bytes", None)
            if cap:
                vmem_phys = int(cap)
        except Exception:
            pass
    if vmem_phys >= 100 * 1024 * 1024:    # v5e / v6e: 128 MiB VMEM -> big tiles
        return 96 * 1024 * 1024, 1024
    return 32 * 1024 * 1024, 256          # v7x: 64 MiB physical VMEM per core


_VMEM_LIMIT, _ROW_TARGET = _device_budget()


def _row_tile(m, target):
    """Row tile: multiple of 8, <= target, leaves >= 2 grid steps when possible."""
    if m <= 8:
        return m
    t = min(target, max(8, m // 2))       # >= 2 parallel steps (v7x: 2 TensorCores)
    return max(8, (t // 8) * 8)


def _pad_rows(x, tile):
    """Zero-pad dim 0 up to a multiple of `tile` (cdiv grid, no full-array fallback)."""
    m = x.shape[0]
    pm = int(pl.cdiv(m, tile)) * tile
    if pm == m:
        return x, m
    pad = [(0, pm - m)] + [(0, 0)] * (x.ndim - 1)
    return jnp.pad(x, pad), m


# ----------------------------------------------------------------------------
# Gridded linear:  o = x @ w + b     (weights pre-cast to compute dtype)
# ----------------------------------------------------------------------------

def _linear_kernel(x_ref, w_ref, b_ref, o_ref):
    x = x_ref[...].astype(w_ref.dtype)               # in-kernel cast of activation
    y = jnp.dot(x, w_ref[...], preferred_element_type=jnp.float32)
    y = y + b_ref[...].astype(jnp.float32)
    o_ref[...] = y.astype(o_ref.dtype)


def linear(x2d, w, b, out_dtype):
    m, kdim = x2d.shape
    n = w.shape[1]
    tm = _row_tile(m, _ROW_TARGET)
    xp, m0 = _pad_rows(x2d, tm)
    mp = xp.shape[0]
    out = pl.pallas_call(
        _linear_kernel,
        out_shape=jax.ShapeDtypeStruct((mp, n), out_dtype),
        grid=(mp // tm,),
        in_specs=[pl.BlockSpec((tm, kdim), lambda i: (i, 0)),
                  pl.BlockSpec((kdim, n), lambda i: (0, 0)),
                  pl.BlockSpec((1, n), lambda i: (0, 0))],
        out_specs=pl.BlockSpec((tm, n), lambda i: (i, 0)),
        compiler_params=pltpu.CompilerParams(
            dimension_semantics=("parallel",),
            vmem_limit_bytes=_VMEM_LIMIT),
    )(xp, w, b.reshape(1, n).astype(jnp.float32))
    return out[:m0] if mp != m0 else out


# ----------------------------------------------------------------------------
# Fused GraphConv (GraphWaveNet gcn + BatchNorm2d eval) + K/V linear projection
# Channel-last input (M, N, C) with M = B*T ; channels stay in the lane dim.
# ----------------------------------------------------------------------------

def _gcn_proj_kernel(adj_ref, x_ref, wg_ref, bg_ref, gamma_ref, beta_ref,
                     rm_ref, rv_ref, wp_ref, bp_ref, o_ref,
                     *, n_graphs, order, eps):
    tm, n_nodes, c_in = x_ref.shape
    cd = wg_ref.dtype                                  # compute dtype (pre-cast)

    x = x_ref[...].astype(jnp.float32)                 # (tm, N, C)
    xs = [x[:, v, :] for v in range(n_nodes)]          # per-node lane-dense (tm, C)

    def a_elem(g, v, w):                               # adjacency scalar from SMEM
        return adj_ref[(g * n_nodes + v) * n_nodes + w]

    # Streaming accumulation: each hop segment is matmul'd into the f32
    # accumulator immediately; only the current hop + accumulator stay live.
    def add_segment(seg_idx, seg_xs, ys):
        w_seg = wg_ref[seg_idx * c_in:(seg_idx + 1) * c_in, :]     # (C, c_mid)
        for n in range(n_nodes):
            upd = jnp.dot(seg_xs[n].astype(cd), w_seg,
                          preferred_element_type=jnp.float32)
            ys[n] = upd if ys[n] is None else ys[n] + upd
        return ys

    ys = add_segment(0, xs, [None] * n_nodes)
    seg = 1
    for g in range(n_graphs):
        xk = xs
        for _ in range(order):
            # graph hop: new[w] = sum_v A_g[v, w] * old[v]   (VPU broadcast-FMAs)
            nxt = []
            for w in range(n_nodes):
                acc = a_elem(g, 0, w) * xk[0]
                for v in range(1, n_nodes):
                    acc = acc + a_elem(g, v, w) * xk[v]
                nxt.append(acc)
            xk = nxt
            ys = add_segment(seg, xk, ys)
            seg += 1

    # BatchNorm2d (eval) over channels + fused K/V projection (f32 BN math;
    # dropout(eval) == identity).  Activation never leaves VMEM before the proj.
    bg = bg_ref[...]
    scale = gamma_ref[...] * jax.lax.rsqrt(rv_ref[...] + eps)       # (1, c_mid)
    shift = beta_ref[...] - rm_ref[...] * scale
    wp = wp_ref[...]                                                # (c_mid, d_proj)
    bp = bp_ref[...]
    for n in range(n_nodes):
        y = (ys[n] + bg) * scale + shift
        out = jnp.dot(y.astype(cd), wp, preferred_element_type=jnp.float32) + bp
        o_ref[:, n, :] = out.astype(o_ref.dtype)


def gcn_project(x_mnc, adj_flat, gcn_p, w_proj, b_proj, out_dtype, compute_dtype):
    """x_mnc: (M, N, C) channel-last.  Returns proj(BN(gcn(x))): (M, N, d_proj)."""
    m, n_nodes, c_in = x_mnc.shape
    order = int(gcn_p['order'])
    k_tot, c_mid = gcn_p['w'].shape
    n_graphs = adj_flat.shape[0] // (n_nodes * n_nodes)
    d_proj = w_proj.shape[1]
    tm = _row_tile(m, max(8, _ROW_TARGET // 4))
    xp, m0 = _pad_rows(x_mnc, tm)
    mp = xp.shape[0]

    kernel = functools.partial(_gcn_proj_kernel, n_graphs=n_graphs, order=order,
                               eps=1e-5)
    _full = lambda i: (0, 0)
    out = pl.pallas_call(
        kernel,
        out_shape=jax.ShapeDtypeStruct((mp, n_nodes, d_proj), out_dtype),
        grid=(mp // tm,),
        in_specs=[pl.BlockSpec(memory_space=pltpu.MemorySpace.SMEM),   # adjacency
                  pl.BlockSpec((tm, n_nodes, c_in), lambda i: (i, 0, 0)),
                  pl.BlockSpec((k_tot, c_mid), _full),
                  pl.BlockSpec((1, c_mid), _full),
                  pl.BlockSpec((1, c_mid), _full),
                  pl.BlockSpec((1, c_mid), _full),
                  pl.BlockSpec((1, c_mid), _full),
                  pl.BlockSpec((1, c_mid), _full),
                  pl.BlockSpec((c_mid, d_proj), _full),
                  pl.BlockSpec((1, d_proj), _full)],
        out_specs=pl.BlockSpec((tm, n_nodes, d_proj), lambda i: (i, 0, 0)),
        compiler_params=pltpu.CompilerParams(
            dimension_semantics=("parallel",),
            vmem_limit_bytes=_VMEM_LIMIT),
    )(adj_flat,
      xp,
      gcn_p['w'].astype(compute_dtype),
      gcn_p['b'].reshape(1, c_mid).astype(jnp.float32),
      gcn_p['gamma'].reshape(1, c_mid).astype(jnp.float32),
      gcn_p['beta'].reshape(1, c_mid).astype(jnp.float32),
      gcn_p['rm'].reshape(1, c_mid).astype(jnp.float32),
      gcn_p['rv'].reshape(1, c_mid).astype(jnp.float32),
      w_proj,
      b_proj.reshape(1, d_proj).astype(jnp.float32))
    return out[:m0] if mp != m0 else out


# ----------------------------------------------------------------------------
# Attention over the time axis per (batch, node, head).
# Grid over batch; nodes sliced from sublanes, heads from contiguous lanes, so no
# HBM-level 5-D transposes are needed around this kernel.
# ----------------------------------------------------------------------------

def _attn_kernel(q_ref, k_ref, v_ref, o_ref, *, n_heads, dk, dv):
    # Blocks: q (L, N, H*dk), k (S, N, H*dk), v (S, N, H*dv), o (L, N, H*dv).
    # 1/sqrt(dk) is already folded into the query projection weights/bias.
    q = q_ref[...]
    k = k_ref[...]
    v = v_ref[...]
    n_nodes = q.shape[1]
    for n in range(n_nodes):
        qn = q[:, n, :]
        kn = k[:, n, :]
        vn = v[:, n, :]
        for h in range(n_heads):
            qh = qn[:, h * dk:(h + 1) * dk]
            kh = kn[:, h * dk:(h + 1) * dk]
            vh = vn[:, h * dv:(h + 1) * dv]
            s = jax.lax.dot_general(qh, kh, (((1,), (1,)), ((), ())),
                                    preferred_element_type=jnp.float32)  # (L, S)
            m = jnp.max(s, axis=-1, keepdims=True)
            p = jnp.exp(s - m)
            l = jnp.sum(p, axis=-1, keepdims=True)
            o = jnp.dot(p.astype(vh.dtype), vh, preferred_element_type=jnp.float32)
            o_ref[:, n, h * dv:(h + 1) * dv] = (
                o * pl.reciprocal(l, approx=True)).astype(o_ref.dtype)


def attention(q, k, v, n_heads, out_dtype):
    B, L, N, E = q.shape
    S = k.shape[1]
    DV = v.shape[3]
    dk = E // n_heads
    dv = DV // n_heads
    kernel = functools.partial(_attn_kernel, n_heads=n_heads, dk=dk, dv=dv)
    return pl.pallas_call(
        kernel,
        out_shape=jax.ShapeDtypeStruct((B, L, N, DV), out_dtype),
        grid=(B,),
        in_specs=[pl.BlockSpec((None, L, N, E), lambda b: (b, 0, 0, 0)),
                  pl.BlockSpec((None, S, N, E), lambda b: (b, 0, 0, 0)),
                  pl.BlockSpec((None, S, N, DV), lambda b: (b, 0, 0, 0))],
        out_specs=pl.BlockSpec((None, L, N, DV), lambda b: (b, 0, 0, 0)),
        compiler_params=pltpu.CompilerParams(
            dimension_semantics=("parallel",),
            vmem_limit_bytes=_VMEM_LIMIT),
    )(q, k, v)


# ----------------------------------------------------------------------------
# Full S2TAttentionLayer forward: all relayouts are free leading-dim reshapes.
# ----------------------------------------------------------------------------

def s2t_attention_forward(queries, keys, values, attn_mask, adj_mats, params,
                          n_heads, compute_dtype=jnp.bfloat16):
    del attn_mask  # TODO(synk): FullAttention without masking assumed (see header).
    B, L, N1, D = queries.shape
    _, S, N2, _ = keys.shape
    H = n_heads
    E = params['wq'].shape[1]       # H * dk
    DV = params['wv'].shape[1]      # H * dv
    dk = E // H

    cd = compute_dtype
    inter_dtype = cd                # dtype of HBM intermediates between kernels

    # ---- parameter prep: fold softmax scale into wq/bq, pre-cast weights -------
    scale = 1.0 / math.sqrt(dk)
    wq = (params['wq'] * scale).astype(cd)
    bq = (params['bq'] * scale).astype(jnp.float32)
    wk = params['wk'].astype(cd)
    wv = params['wv'].astype(cd)
    wo = params['wo'].astype(cd)
    adj_flat = adj_mats.reshape(-1).astype(jnp.float32)

    # ---- query projection; output stays in (B, L, N, H*dk) layout --------------
    q = linear(queries.reshape(B * L * N1, D), wq, bq, out_dtype=inter_dtype)
    q = q.reshape(B, L, N1, E)

    # ---- fused GCN + BN + K/V projections (channel-last; no wrapper transposes) -
    k = gcn_project(keys.reshape(B * S, N2, D), adj_flat, params['gcn1'], wk,
                    params['bk'], out_dtype=inter_dtype, compute_dtype=cd)
    v = gcn_project(values.reshape(B * S, N2, D), adj_flat, params['gcn2'], wv,
                    params['bv'], out_dtype=inter_dtype, compute_dtype=cd)
    k = k.reshape(B, S, N2, E)
    v = v.reshape(B, S, N2, DV)

    # ---- inner attention (nodes/heads sliced in-kernel) ------------------------
    o = attention(q, k, v, H, out_dtype=inter_dtype)        # (B, L, N, H*dv)

    # ---- output projection ------------------------------------------------------
    out = linear(o.reshape(B * L * N1, DV), wo, params['bo'], out_dtype=jnp.float32)
    return out.reshape(B, L, N1, D)


# ----------------------------------------------------------------------------
# Pure-JAX reference (same math, no Pallas) for verification
# ----------------------------------------------------------------------------

def _ref_gcn(x, adj, p):
    M, N, C = x.shape
    outs = [x]
    for g in range(adj.shape[0]):
        xk = x
        for _ in range(p['order']):
            xk = jnp.einsum('vw,mvc->mwc', adj[g], xk)
            outs.append(xk)
    h = jnp.concatenate(outs, axis=-1).reshape(M * N, -1) @ p['w'] + p['b']
    h = (h - p['rm']) * jax.lax.rsqrt(p['rv'] + 1e-5) * p['gamma'] + p['beta']
    return h.reshape(M, N, -1)


def _ref_forward(queries, keys, values, adj_mats, params, n_heads):
    B, L, N1, D = queries.shape
    _, S, N2, _ = keys.shape
    H = n_heads
    dk = params['wq'].shape[1] // H
    dv = params['wv'].shape[1] // H

    q = (queries.reshape(B * L * N1, D) @ params['wq'] + params['bq']).reshape(B, L, N1, H, dk)
    gk = _ref_gcn(keys.reshape(B * S, N2, D), adj_mats, params['gcn1'])
    k = (gk.reshape(B * S * N2, D) @ params['wk'] + params['bk']).reshape(B, S, N2, H, dk)
    gv = _ref_gcn(values.reshape(B * S, N2, D), adj_mats, params['gcn2'])
    v = (gv.reshape(B * S * N2, D) @ params['wv'] + params['bv']).reshape(B, S, N2, H, dv)

    q = q.transpose(0, 2, 1, 3, 4)
    k = k.transpose(0, 2, 1, 3, 4)
    v = v.transpose(0, 2, 1, 3, 4)

    scores = jnp.einsum('bnlhe,bnshe->bnhls', q, k) / jnp.sqrt(jnp.float32(dk))
    p = jax.nn.softmax(scores, axis=-1)
    nv = jnp.einsum('bnhls,bnshd->bnlhd', p, v).reshape(B, N1, L, H * dv)
    nv = nv.transpose(0, 2, 1, 3)
    out = nv.reshape(B * L * N1, H * dv) @ params['wo'] + params['bo']
    return out.reshape(B, L, N1, D)


# ----------------------------------------------------------------------------
# Main
# ----------------------------------------------------------------------------

def _make_gcn_params(key, c_in, c_out, n_graphs, order):
    ks = jax.random.split(key, 6)
    return {
        'w': 0.1 * jax.random.normal(ks[0], ((n_graphs * order + 1) * c_in, c_out), jnp.float32),
        'b': 0.1 * jax.random.normal(ks[1], (c_out,), jnp.float32),
        'gamma': 1.0 + 0.1 * jax.random.normal(ks[2], (c_out,), jnp.float32),
        'beta': 0.1 * jax.random.normal(ks[3], (c_out,), jnp.float32),
        'rm': 0.1 * jax.random.normal(ks[4], (c_out,), jnp.float32),
        'rv': 1.0 + 0.1 * jnp.abs(jax.random.normal(ks[5], (c_out,), jnp.float32)),
        'order': order,
    }


if __name__ == "__main__":
    B, L, S, N, D, H = 2, 8, 8, 4, 32, 4
    n_graphs, order = 3, 2
    dk = dv = D // H

    key = jax.random.PRNGKey(0)
    ks = jax.random.split(key, 16)

    params = {
        'wq': 0.1 * jax.random.normal(ks[0], (D, H * dk), jnp.float32),
        'bq': 0.1 * jax.random.normal(ks[1], (H * dk,), jnp.float32),
        'wk': 0.1 * jax.random.normal(ks[2], (D, H * dk), jnp.float32),
        'bk': 0.1 * jax.random.normal(ks[3], (H * dk,), jnp.float32),
        'wv': 0.1 * jax.random.normal(ks[4], (D, H * dv), jnp.float32),
        'bv': 0.1 * jax.random.normal(ks[5], (H * dv,), jnp.float32),
        'wo': 0.1 * jax.random.normal(ks[6], (H * dv, D), jnp.float32),
        'bo': 0.1 * jax.random.normal(ks[7], (D,), jnp.float32),
        'gcn1': _make_gcn_params(ks[8], D, D, n_graphs, order),
        'gcn2': _make_gcn_params(ks[9], D, D, n_graphs, order),
    }

    queries = jax.random.normal(ks[10], (B, L, N, D), jnp.float32)
    keys_in = jax.random.normal(ks[11], (B, S, N, D), jnp.float32)
    values_in = jax.random.normal(ks[12], (B, S, N, D), jnp.float32)
    adj_mats = jax.nn.softmax(jax.random.normal(ks[13], (n_graphs, N, N), jnp.float32), axis=-1)

    ref = _ref_forward(queries, keys_in, values_in, adj_mats, params, H)

    # f32 path: exact up to op order + the EUP approximate softmax reciprocal.
    out_f32 = s2t_attention_forward(queries, keys_in, values_in, None, adj_mats,
                                    params, H, compute_dtype=jnp.float32)
    out_f32 = jax.block_until_ready(out_f32)
    np.testing.assert_allclose(np.asarray(out_f32), np.asarray(ref), rtol=2e-3, atol=2e-3)

    # throughput path: bf16 MXU operands, bf16 HBM intermediates, f32 accum/BN/softmax.
    out_bf16 = s2t_attention_forward(queries, keys_in, values_in, None, adj_mats,
                                     params, H, compute_dtype=jnp.bfloat16)
    out_bf16 = jax.block_until_ready(out_bf16)
    np.testing.assert_allclose(np.asarray(out_bf16), np.asarray(ref), rtol=5e-2, atol=5e-2)

    assert out_f32.shape == (B, L, N, D) and out_bf16.shape == (B, L, N, D)
    print("KERNEL_OK")
</pallas_src>

<mosaic_0001>
module attributes {stable_mosaic.version = 11 : i64} {
  func.func @_linear_kernel(%arg0: i32, %arg1: memref<32x32xf32, #tpu.memory_space<vmem>>, %arg2: memref<32x32xf32, #tpu.memory_space<vmem>>, %arg3: memref<1x32xf32, #tpu.memory_space<vmem>>, %arg4: memref<32x32xf32, #tpu.memory_space<vmem>>) attributes {dimension_semantics = [#tpu.dimension_semantics<parallel>], iteration_bounds = array<i64: 2>, scalar_prefetch = 0 : i64, scratch_operands = 0 : i64, tpu.core_type = #tpu.core_type<tc>, window_params = [{transform_indices = @transform_0, window_bounds = array<i64: 32, 32>}, {pipeline_mode = #tpu.pipeline_mode<synchronous>, transform_indices = @transform_1, window_bounds = array<i64: 32, 32>}, {pipeline_mode = #tpu.pipeline_mode<synchronous>, transform_indices = @transform_2, window_bounds = array<i64: 1, 32>}, {transform_indices = @transform_3, window_bounds = array<i64: 32, 32>}]} {
    %c0 = arith.constant 0 : index
    %c0_0 = arith.constant 0 : index
    %0 = vector.load %arg1[%c0, %c0_0] : memref<32x32xf32, #tpu.memory_space<vmem>>, vector<32x32xf32>
    %c0_1 = arith.constant 0 : index
    %c0_2 = arith.constant 0 : index
    %1 = vector.load %arg2[%c0_1, %c0_2] : memref<32x32xf32, #tpu.memory_space<vmem>>, vector<32x32xf32>
    %cst = arith.constant dense<0.000000e+00> : vector<32x32xf32>
    %2 = tpu.matmul %0, %1, %cst {dimension_numbers = #tpu.dot_dimension_numbers<[1], [0], [0], [1], [0, 0, 1, 1], [], []>} : vector<32x32xf32>, vector<32x32xf32>, vector<32x32xf32> -> vector<32x32xf32>
    %c0_3 = arith.constant 0 : index
    %c0_4 = arith.constant 0 : index
    %3 = vector.load %arg3[%c0_3, %c0_4] : memref<1x32xf32, #tpu.memory_space<vmem>>, vector<1x32xf32>
    %4 = vector.broadcast %3 : vector<1x32xf32> to vector<32x32xf32>
    %5 = arith.addf %2, %4 : vector<32x32xf32>
    %c0_5 = arith.constant 0 : index
    %c0_6 = arith.constant 0 : index
    %6 = vector.load %arg4[%c0_5, %c0_6] : memref<32x32xf32, #tpu.memory_space<vmem>>, vector<32x32xf32>
    tpu.vector_store %arg4[%c0_5, %c0_6], %5 {strides = array<i32>} : memref<32x32xf32, #tpu.memory_space<vmem>>, vector<32x32xf32>,
    return
  }
  func.func @transform_0(%arg0: i32) -> (i32, i32) {
    %c0_i32 = arith.constant 0 : i32
    %c0_i32_0 = arith.constant 0 : i32
    return %arg0, %c0_i32 : i32, i32
  }
  func.func @transform_1(%arg0: i32) -> (i32, i32) {
    %c0_i32 = arith.constant 0 : i32
    %c0_i32_0 = arith.constant 0 : i32
    %c0_i32_1 = arith.constant 0 : i32
    return %c0_i32, %c0_i32_0 : i32, i32
  }
  func.func @transform_2(%arg0: i32) -> (i32, i32) {
    %c0_i32 = arith.constant 0 : i32
    %c0_i32_0 = arith.constant 0 : i32
    %c0_i32_1 = arith.constant 0 : i32
    return %c0_i32, %c0_i32_0 : i32, i32
  }
  func.func @transform_3(%arg0: i32) -> (i32, i32) {
    %c0_i32 = arith.constant 0 : i32
    %c0_i32_0 = arith.constant 0 : i32
    return %arg0, %c0_i32 : i32, i32
  }
}

</mosaic_0001>

<llo_original>
// kernel: tpu_custom_call.1
$region0: #{tpu_custom_call.1}
  #allocation0 [shape = 'u32[]', space=smem, size = 0x4, offset = 0x4, fixed_abs, tag = 'smem constant byte address 0x4 - core index']
  #allocation1 [shape = 'u32[144,128]{1,0:T(1,128)}', space=vmem, size = 0x12000, scoped, tag = 'internal scratch']
  %s0 = inlined_call_operand.vmem [shape: f32[64,32], index: 0, kind: input, shape index: {}]
  %s1 = inlined_call_operand.vmem [shape: f32[32,32], index: 1, kind: input, shape index: {}]
  %s2 = inlined_call_operand.vmem [shape: f32[1,32], index: 2, kind: input, shape index: {}]
  %s3 = inlined_call_operand.vmem [shape: f32[64,32], index: 3, kind: output, shape index: {}]
  %s4 = sld [smem:[#allocation0]]
  $region45: #{tpu_custom_call.1} parent=0
    _
  %s6 = ssub.s32 1, %s4
  %s7 = scalar_select 0, %s6, %s4
  loop: start=0, step=1, limit=4
  $region2: #{tpu_custom_call.1} parent=0 // loop_pre_header
    _
  $region3: #{tpu_custom_call.1} parent=0 // loop_header
    %s9 = sphi 0, %s13
    %p10 = scmp.ge.s32.totalorder %s9, 4
    %s19 = sphi 0, %s21
    %s22 = sphi 0, %s19
    %s23 = sphi 0, %s22
    %s39 = sphi 0, %s23
    %s43 = sphi 0, %s43
    %s45 = sphi 0, %s43
    %s46 = sphi 0, %s45
    %s60 = sphi 0, %s46
    %s64 = sphi 0, %s64
    %s66 = sphi 0, %s64
    %s67 = sphi 0, %s66
    %s81 = sphi 0, %s67
    %s87 = sphi 0, %s89
    %s90 = sphi 0, %s87
    %s91 = sphi 0, %s90
    %s107 = sphi 0, %s91
  $region4: #{tpu_custom_call.1} parent=0 // loop_header_branch
    %12 = sbr.rel (%p10) target = $region8
  $region5: #{tpu_custom_call.1} parent=0 // loop_body
    %s14 = ssub.s32 %s9, 1
    %s15 = ssub.s32 %s9, 2
    %s16 = sadd.s32 %s9, 1
    %s17 = ssub.s32 %s9, %s16
    %p18 = scmp.eq.s32.totalorder %s17, 0
    %s20 = sadd.s32 %s19, 1
    %s21 = scalar_select %p18, %s19, %s20
    %p24 = pneg %p18
    %p25 = scmp.eq.s32.totalorder %s9, 1
    %p26 = por %p24, %p25
    %p27 = scmp.ne.s32.totalorder %s19, %s22
    %p28 = scmp.eq.s32.totalorder %s9, 0
    %p29 = por %p27, %p28
    %p30 = scmp.ne.s32.totalorder %s19, %s22
    %p31 = scmp.eq.s32.totalorder %s14, 1
    %p32 = por %p30, %p31
    %p33 = scmp.ne.s32.totalorder %s22, %s23
    %p34 = scmp.eq.s32.totalorder %s14, 0
    %p35 = por %p33, %p34
    %p36 = scmp.ne.s32.totalorder %s22, %s23
    %p37 = scmp.eq.s32.totalorder %s15, 1
    %p38 = por %p36, %p37
    %p40 = scmp.ne.s32.totalorder %s23, %s39
    %p41 = scmp.eq.s32.totalorder %s15, 0
    %p42 = por %p40, %p41
    %s44 = sadd.s32 %s43, 1
    %p47 = scmp.eq.s32.totalorder %s9, 1
    %p48 = scmp.ne.s32.totalorder %s43, %s45
    %p49 = scmp.eq.s32.totalorder %s9, 0
    %p50 = por %p48, %p49
    %p51 = scmp.ne.s32.totalorder %s43, %s45
    %p52 = scmp.eq.s32.totalorder %s14, 1
    %p53 = por %p51, %p52
    %p54 = scmp.ne.s32.totalorder %s45, %s46
    %p55 = scmp.eq.s32.totalorder %s14, 0
    %p56 = por %p54, %p55
    %p57 = scmp.ne.s32.totalorder %s45, %s46
    %p58 = scmp.eq.s32.totalorder %s15, 1
    %p59 = por %p57, %p58
    %p61 = scmp.ne.s32.totalorder %s46, %s60
    %p62 = scmp.eq.s32.totalorder %s15, 0
    %p63 = por %p61, %p62
    %s65 = sadd.s32 %s64, 1
    %p68 = scmp.eq.s32.totalorder %s9, 1
    %p69 = scmp.ne.s32.totalorder %s64, %s66
    %p70 = scmp.eq.s32.totalorder %s9, 0
    %p71 = por %p69, %p70
    %p72 = scmp.ne.s32.totalorder %s64, %s66
    %p73 = scmp.eq.s32.totalorder %s14, 1
    %p74 = por %p72, %p73
    %p75 = scmp.ne.s32.totalorder %s66, %s67
    %p76 = scmp.eq.s32.totalorder %s14, 0
    %p77 = por %p75, %p76
    %p78 = scmp.ne.s32.totalorder %s66, %s67
    %p79 = scmp.eq.s32.totalorder %s15, 1
    %p80 = por %p78, %p79
    %p82 = scmp.ne.s32.totalorder %s67, %s81
    %p83 = scmp.eq.s32.totalorder %s15, 0
    %p84 = por %p82, %p83
    %s85 = ssub.s32 %s9, %s16
    %p86 = scmp.eq.s32.totalorder %s85, 0
    %s88 = sadd.s32 %s87, 1
    %s89 = scalar_select %p86, %s87, %s88
    %p92 = pneg %p86
    %p93 = scmp.eq.s32.totalorder %s9, 1
    %p94 = por %p92, %p93
    %p95 = scmp.ne.s32.totalorder %s87, %s90
    %p96 = scmp.eq.s32.totalorder %s9, 0
    %p97 = por %p95, %p96
    %p98 = scmp.ne.s32.totalorder %s87, %s90
    %p99 = scmp.eq.s32.totalorder %s14, 1
    %p100 = por %p98, %p99
    %p101 = scmp.ne.s32.totalorder %s90, %s91
    %p102 = scmp.eq.s32.totalorder %s14, 0
    %p103 = por %p101, %p102
    %p104 = scmp.ne.s32.totalorder %s90, %s91
    %p105 = scmp.eq.s32.totalorder %s15, 1
    %p106 = por %p104, %p105
    %p108 = scmp.ne.s32.totalorder %s91, %s107
    %p109 = scmp.eq.s32.totalorder %s15, 0
    %p110 = por %p108, %p109
    %p111 = scmp.le.s32.totalorder 1, %s9
    %p112 = scmp.lt.s32.totalorder %s9, 3
    %p113 = pnand %p111, %p112
    %p114 = pneg %p113
    // Predicated region
    $region9: #{tpu_custom_call.1} parent=5 // pred_check
      _
    $region10: #{tpu_custom_call.1} parent=5 // pred_check_branch
      %116 = sbr.rel (%p113) target = $region12
    $region11: #{tpu_custom_call.1} parent=5 // pred_region
      %s117 = ssub.s32 %s9, 1
      // Predicated region
      $region13: #{tpu_custom_call.1} parent=11 // pred_check
        %p118 = pneg %p56
      $region14: #{tpu_custom_call.1} parent=11 // pred_check_branch
        %120 = sbr.rel (%p118) target = $region16
      $region15: #{tpu_custom_call.1} parent=11 // pred_region
        _
      $region16: #{tpu_custom_call.1} parent=11 // pred_fallthru
        _
      // Predicated region
      $region17: #{tpu_custom_call.1} parent=11 // pred_check
        %p121 = pneg %p77
      $region18: #{tpu_custom_call.1} parent=11 // pred_check_branch
        %123 = sbr.rel (%p121) target = $region20
      $region19: #{tpu_custom_call.1} parent=11 // pred_region
        _
      $region20: #{tpu_custom_call.1} parent=11 // pred_fallthru
        _
    $region12: #{tpu_custom_call.1} parent=5 // pred_fallthru
      _
    %p124 = scmp.lt.s32.totalorder %s9, 2
    // Predicated region
    $region21: #{tpu_custom_call.1} parent=5 // pred_check
      %p125 = pneg %p124
    $region22: #{tpu_custom_call.1} parent=5 // pred_check_branch
      %127 = sbr.rel (%p125) target = $region24
    $region23: #{tpu_custom_call.1} parent=5 // pred_region
      // Predicated region
      $region25: #{tpu_custom_call.1} parent=23 // pred_check
        %p128 = pneg %p29
      $region26: #{tpu_custom_call.1} parent=23 // pred_check_branch
        %130 = sbr.rel (%p128) target = $region28
      $region27: #{tpu_custom_call.1} parent=23 // pred_region
        %s131 = smul.u32 4, %s9
        %p132 = scmp.lt.s32.totalorder %s131, 7
        %s133 = scalar_select %p132, %s131, 7
        %s134 = smul.addr %s133, 8
        %s135 = scalar_lea.vmem %s0, %s134
        %s136 = smul.u32 4, %s9
      $region28: #{tpu_custom_call.1} parent=23 // pred_fallthru
        _
    $region24: #{tpu_custom_call.1} parent=5 // pred_fallthru
      _
    %p137 = scmp.le.s32.totalorder 1, %s9
    %p138 = scmp.lt.s32.totalorder %s9, 3
    %p139 = pnand %p137, %p138
    %p140 = pneg %p139
    // Predicated region
    $region29: #{tpu_custom_call.1} parent=5 // pred_check
      _
    $region30: #{tpu_custom_call.1} parent=5 // pred_check_branch
      %142 = sbr.rel (%p139) target = $region32
    $region31: #{tpu_custom_call.1} parent=5 // pred_region
      %s143 = ssub.s32 %s9, 1
      %s144 = smul.u32 4, %s14
      %p145 = scmp.lt.s32.totalorder %s144, 7
      %s146 = scalar_select %p145, %s144, 7
      %s147 = smul.addr %s146, 8
      %s148 = scalar_lea.vmem %s0, %s147
      %p149 = pneg %p35
      %p150 = pneg %p32
      %p151 = pneg %p56
      %p152 = pneg %p53
      %p153 = pneg %p77
      %p154 = pneg %p74
      %p155 = pneg %p103
      %p156 = pneg %p100
      %s157 = smul.u32 4, %s14
      %p158 = scmp.lt.s32.totalorder %s157, 7
      %s159 = scalar_select %p158, %s157, 7
      %s160 = smul.addr %s159, 8
      %s161 = scalar_lea.vmem %s3, %s160
      %s162 = smul.u32 4, %s14
      %p163 = scmp.lt.s32.totalorder %s162, 7
      %s164 = scalar_select %p163, %s162, 7
      %s165 = smul.addr %s164, 8
      %s166 = scalar_lea.vmem %s0, %s165
      %s167 = smul.u32 4, %s14
      %s168 = smul.u32 4, %s14
      %p169 = scmp.lt.s32.totalorder %s168, 7
      %s170 = scalar_select %p169, %s168, 7
      %s171 = smul.addr %s170, 8
      %s172 = scalar_lea.vmem %s3, %s171
      %s173 = smul.u32 4, %s14
      %v174 = vld [vmem:[%s166] sm:$0xff]
      %v175 = vld [vmem:[%s166 + $0x8] sm:$0xff]
      %v176 = vld [vmem:[%s166 + $0x10] sm:$0xff]
      %v177 = vld [vmem:[%s166 + $0x18] sm:$0xff]
      %v178 = vld [vmem:[%s1] sm:$0xff]
      %v179 = vld [vmem:[%s1 + $0x8] sm:$0xff]
      %v180 = vld [vmem:[%s1 + $0x10] sm:$0xff]
      %v181 = vld [vmem:[%s1 + $0x18] sm:$0xff]
      %v182 = vld [vmem:[%s2] sm:$0x1]
      %v184 = vlaneseq
      %v185 = vshrl.u32 %v184, 7
      %v186 = vsub.s32 0, %v185
      %v187 = vrot.slane %v182, %v186
      %vm189 = vcmask 261120
      %v191 = vsel %vm189, %v174, 0
      %v194 = vsel %vm189, %v175, 0
      %v197 = vsel %vm189, %v176, 0
      %v200 = vsel %vm189, %v177, 0
      %202 = vmatprep.subr.mxu0 0.0
      %203 = vmatpush1.msra.mxu0 %v178
      %204 = vmatprep.subr.mxu0 0.0
      %205 = vmatpush1.msra.mxu0 %v179
      %206 = vmatprep.subr.mxu0 0.0
      %207 = vmatpush1.msra.mxu0 %v180
      %208 = vmatprep.subr.mxu0 0.0
      %209 = vmatpush1.msra.mxu0 %v181
      %210 = vmatprep.subr.mxu0 0.0
      %211 = vmatpush1.msra.mxu0 0.0
      %212 = vmatprep.subr.mxu0 0.0
      %213 = vmatpush1.msra.mxu0 0.0
      %214 = vmatprep.subr.mxu0 0.0
      %215 = vmatpush1.msra.mxu0 0.0
      %216 = vmatprep.subr.mxu0 0.0
      %217 = vmatpush1.msra.mxu0 0.0
      %218 = vmatprep.subr.mxu0 0.0
      %219 = vmatpush1.msra.mxu0 0.0
      %220 = vmatprep.subr.mxu0 0.0
      %221 = vmatpush1.msra.mxu0 0.0
      %222 = vmatprep.subr.mxu0 0.0
      %223 = vmatpush1.msra.mxu0 0.0
      %224 = vmatprep.subr.mxu0 0.0
      %225 = vmatpush1.msra.mxu0 0.0
      %226 = vmatprep.subr.mxu0 0.0
      %227 = vmatpush1.msra.mxu0 0.0
      %228 = vmatprep.subr.mxu0 0.0
      %229 = vmatpush1.msra.mxu0 0.0
      %230 = vmatprep.subr.mxu0 0.0
      %231 = vmatpush1.msra.mxu0 0.0
      %232 = vmatprep.subr.mxu0 0.0
      %233 = vmatpush1.msra.mxu0 0.0
      %234 = vmatprep.subr.mxu0 0.0
      %235 = vmatpush1.msra.mxu0 0.0
      %236 = vmatprep.subr.mxu0 0.0
      %237 = vmatpush1.msra.mxu0 0.0
      %238 = vmatprep.subr.mxu0 0.0
      %239 = vmatpush1.msra.mxu0 0.0
      %240 = vmatprep.subr.mxu0 0.0
      %241 = vmatpush1.msra.mxu0 0.0
      %242 = vmatprep.subr.mxu0 0.0
      %243 = vmatpush1.msra.mxu0 0.0
      %244 = vmatprep.subr.mxu0 0.0
      %245 = vmatpush1.msra.mxu0 0.0
      %246 = vmatprep.subr.mxu0 0.0
      %247 = vmatpush1.msra.mxu0 0.0
      %248 = vmatprep.subr.mxu0 0.0
      %249 = vmatpush1.msra.mxu0 0.0
      %250 = vmatprep.subr.mxu0 0.0
      %251 = vmatpush1.msra.mxu0 0.0
      %252 = vmatprep.subr.mxu0 0.0
      %253 = vmatpush1.msra.mxu0 0.0
      %254 = vmatprep.subr.mxu0 0.0
      %255 = vmatpush1.msra.mxu0 0.0
      %256 = vmatprep.subr.mxu0 0.0
      %257 = vmatpush1.msra.mxu0 0.0
      %258 = vmatprep.subr.mxu0 0.0
      %259 = vmatpush1.msra.mxu0 0.0
      %260 = vmatprep.subr.mxu0 0.0
      %261 = vmatpush1.msra.mxu0 0.0
      %262 = vmatprep.subr.mxu0 0.0
      %263 = vmatpush1.msra.mxu0 0.0
      %264 = vmatprep.subr.mxu0 0.0
      %265 = vmatpush1.msra.mxu0 0.0
      %266 = vmatprep.mubr.f32.mxu0 0.0
      %267 = vmatmul.mubr.f32.gmra.mrb[0].mxu0 %v191
      %v268 = vpop.f32.mrb[0].mxu0
      %v269 = vadd.f32 %v187, %v268
      %v270 = vpop.f32.mrb[0].mxu0
      %271 = vmatprep.mubr.f32.mxu0 0.0
      %272 = vmatmul.mubr.f32.gmra.mrb[0].mxu0 %v194
      %v273 = vpop.f32.mrb[0].mxu0
      %v274 = vadd.f32 %v187, %v273
      %v275 = vpop.f32.mrb[0].mxu0
      %276 = vmatprep.mubr.f32.mxu0 0.0
      %277 = vmatmul.mubr.f32.gmra.mrb[0].mxu0 %v197
      %v278 = vpop.f32.mrb[0].mxu0
      %v279 = vadd.f32 %v187, %v278
      %v280 = vpop.f32.mrb[0].mxu0
      %281 = vmatprep.mubr.f32.mxu0 0.0
      %282 = vmatmul.mubr.f32.gmra.mrb[0].mxu0 %v200
      %v283 = vpop.f32.mrb[0].mxu0
      %v284 = vadd.f32 %v187, %v283
      %v285 = vpop.f32.mrb[0].mxu0
      %286 = vdwg.mxu0
      %287 = vst.msk [vmem:[%s172] sm:$0xff] %vm189, %v269
      %288 = vst.msk [vmem:[%s172 + $0x8] sm:$0xff] %vm189, %v274
      %289 = vst.msk [vmem:[%s172 + $0x10] sm:$0xff] %vm189, %v279
      %290 = vst.msk [vmem:[%s172 + $0x18] sm:$0xff] %vm189, %v284
      %s291 = smul.u32 4, %s14
      %p292 = scmp.lt.s32.totalorder %s291, 7
      %s293 = scalar_select %p292, %s291, 7
      %s294 = smul.addr %s293, 8
      %s295 = scalar_lea.vmem %s3, %s294
      // Predicated region
      $region33: #{tpu_custom_call.1} parent=31 // pred_check
        %p296 = pneg %p100
      $region34: #{tpu_custom_call.1} parent=31 // pred_check_branch
        %298 = sbr.rel (%p296) target = $region36
      $region35: #{tpu_custom_call.1} parent=31 // pred_region
        %s299 = smul.u32 4, %s14
      $region36: #{tpu_custom_call.1} parent=31 // pred_fallthru
        _
    $region32: #{tpu_custom_call.1} parent=5 // pred_fallthru
      _
    %p300 = scmp.le.s32.totalorder 2, %s9
    // Predicated region
    $region37: #{tpu_custom_call.1} parent=5 // pred_check
      %p301 = pneg %p300
    $region38: #{tpu_custom_call.1} parent=5 // pred_check_branch
      %303 = sbr.rel (%p301) target = $region40
    $region39: #{tpu_custom_call.1} parent=5 // pred_region
      %s304 = ssub.s32 %s9, 2
      // Predicated region
      $region41: #{tpu_custom_call.1} parent=39 // pred_check
        %p305 = pneg %p106
      $region42: #{tpu_custom_call.1} parent=39 // pred_check_branch
        %307 = sbr.rel (%p305) target = $region44
      $region43: #{tpu_custom_call.1} parent=39 // pred_region
        %s308 = smul.u32 4, %s15
        %p309 = scmp.lt.s32.totalorder %s308, 7
        %s310 = scalar_select %p309, %s308, 7
        %s311 = smul.addr %s310, 8
        %s312 = scalar_lea.vmem %s3, %s311
      $region44: #{tpu_custom_call.1} parent=39 // pred_fallthru
        _
    $region40: #{tpu_custom_call.1} parent=5 // pred_fallthru
      _
  $region6: #{tpu_custom_call.1} parent=0 // loop_footer
    %s13 = sadd.s32 1, %s9
  $region7: #{tpu_custom_call.1} parent=0 // loop_footer_branch
    %8 = sbr.rel target = $region3
  $region8: #{tpu_custom_call.1} parent=0 // loop_exit
    _

</llo_original>
